<compile_context>
chip_gen: v7x
topology: tpu7x:2x2x1
jax: 0.10.0
libtpu: 0.0.40
codegen_flags: <defaults>
</compile_context>

<pallas_src>
import jax
import jax.numpy as jnp
import numpy as np
from jax import lax
from jax.experimental import pallas as pl
from jax.experimental.pallas import tpu as pltpu


# ----------------------------------------------------------------------------
# Kernel
# ----------------------------------------------------------------------------
def _avg_pool_pad_kernel(a_ref, h_ref, o_ref):
    """3x3 / stride-2 average pool (count_include_pad=False) on parity planes.

    a_ref: (4, bho, wo, cb)  parity planes of this row tile / lane block:
           a_ref[2*a + b, p, q, l] = img_l[2*(p0 + p) + a, 2*q + b], a,b in {0,1}
    h_ref: (4, 1, wo, cb)    first parity row of the NEXT row tile (halo);
                             its contents are irrelevant (masked) on the last tile.
    o_ref: (bho, wo, cb)
    """
    bho, wo, cb = o_ref.shape
    f32 = jnp.float32

    is_last_tile = pl.program_id(2) == pl.num_programs(2) - 1

    # --- taps (dr, dc) in {0,1}x{0,1}: the 2x2 interior of every window ------
    s = (a_ref[0].astype(f32) + a_ref[1].astype(f32)
         + a_ref[2].astype(f32) + a_ref[3].astype(f32))

    # --- taps with dr == 2 (window row 2p+2) ---------------------------------
    # Shifted row stream = tile rows 1..bho-1 followed by the halo row.  On the
    # last tile that row lies outside the image: zero it (it is also excluded
    # from the denominator via the 3/2 last-row factor below).
    halo0 = jnp.where(is_last_tile, 0.0, h_ref[0].astype(f32))       # (1, wo, cb)
    halo1 = jnp.where(is_last_tile, 0.0, h_ref[1].astype(f32))
    down0 = jnp.concatenate([a_ref[0, 1:, :, :].astype(f32), halo0], axis=0)
    down1 = jnp.concatenate([a_ref[1, 1:, :, :].astype(f32), halo1], axis=0)
    s = s + down0 + down1

    # --- taps with dc == 2 (window col 2q+2) ---------------------------------
    # They exist only for output cols 0..wo-2 (col 2q+2 == W is outside the
    # image for q == wo-1); fold them in through a zero right column.
    right = (a_ref[0, :, 1:, :].astype(f32) + a_ref[2, :, 1:, :].astype(f32)
             + down0[:, 1:, :])                                      # (bho, wo-1, cb)
    s = s + jnp.concatenate([right, jnp.zeros((bho, 1, cb), f32)], axis=1)

    # --- count_include_pad=False denominators --------------------------------
    # 9 in the interior, 6 on the last row / last column (only 2 valid rows /
    # cols there), 4 in the corner: scale = 1/9 * (3/2 last row) * (3/2 last col)
    row_idx = lax.broadcasted_iota(jnp.int32, (bho, 1, 1), 0)
    col_idx = lax.broadcasted_iota(jnp.int32, (1, wo, 1), 1)
    row_f = jnp.where(jnp.logical_and(is_last_tile, row_idx == bho - 1), 1.5, 1.0)
    col_f = jnp.where(col_idx == wo - 1, 1.5, 1.0)
    o_ref[...] = (s * (row_f * col_f * (1.0 / 9.0))).astype(o_ref.dtype)


# ----------------------------------------------------------------------------
# Tiling heuristics
# ----------------------------------------------------------------------------
def _pick_tiles(ho, wo, lanes, itemsize, budget_bytes=4 * 1024 * 1024):
    """Pick (row tile, lane block) so double-buffered blocks fit VMEM."""

    def block_bytes(bho, cb):
        # main tile + halo + output tile, each double-buffered by the pipeline
        return 2 * ((4 * bho + 4) + bho) * wo * cb * itemsize

    # Lane block: multiples of 128 (lane-dense stores) when possible; grow up
    # to 512 in the small-spatial regime so DMAs stay large and grid steps few.
    if lanes % 128 == 0:
        cb = 128
        while (cb < 512 and lanes % (cb * 2) == 0
               and block_bytes(min(ho, 32), cb * 2) <= budget_bytes):
            cb *= 2
    else:
        # TODO(synk): pad the lane dim up to a multiple of 128 (slicing the pad
        # off afterwards) for lane-dense stores when lanes % 128 != 0
        # (NASNet channel counts 42/84/168/336 hit this path).
        cb = lanes

    # Row tile: largest divisor of ho whose blocks fit the VMEM budget (keep
    # >= 2 rows so the in-kernel row shift never degenerates).
    divisors = [d for d in range(2, ho + 1) if ho % d == 0]
    fitting = [d for d in divisors if block_bytes(d, cb) <= budget_bytes]
    bho = max(fitting) if fitting else min(divisors)
    # Prefer >= 2 row tiles when the shape allows it so v7x's second TensorCore
    # gets work even at batch 1 / a single lane block.
    if bho == ho and len(fitting) > 1:
        bho = sorted(fitting)[-2]
    return bho, cb


# ----------------------------------------------------------------------------
# Core pallas_call (shared by the NCHW and NHWC wrappers)
# ----------------------------------------------------------------------------
def _avg_pool_pad_core(x5, out_dtype):
    """x5: (B, 4, ho, wo, lanes) parity planes -> (B, ho, wo, lanes) pooled."""
    b, four, ho, wo, lanes = x5.shape
    assert four == 4
    bho, cb = _pick_tiles(ho, wo, lanes, x5.dtype.itemsize)
    nrt, ncb = ho // bho, lanes // cb

    in_bytes = x5.size * x5.dtype.itemsize
    out_bytes = b * ho * wo * lanes * jnp.dtype(out_dtype).itemsize

    return pl.pallas_call(
        _avg_pool_pad_kernel,
        out_shape=jax.ShapeDtypeStruct((b, ho, wo, lanes), out_dtype),
        grid=(b, ncb, nrt),
        in_specs=[
            # main parity-plane tile for this (batch, lane block, row tile)
            pl.BlockSpec((None, 4, bho, wo, cb),
                         lambda bb, cc, r: (bb, 0, r, 0, cc)),
            # 1-row halo: first parity row of the next row tile (any in-bounds
            # row on the last tile -- its value is masked inside the kernel)
            pl.BlockSpec((None, 4, 1, wo, cb),
                         lambda bb, cc, r: (bb, 0, ((r + 1) * bho) % ho, 0, cc)),
        ],
        out_specs=pl.BlockSpec((None, bho, wo, cb),
                               lambda bb, cc, r: (bb, r, 0, cc)),
        compiler_params=pltpu.CompilerParams(
            dimension_semantics=("parallel", "parallel", "parallel"),
            # Let XLA fuse the reshape/transpose producer of x5 into the
            # pallas_call operands instead of materializing it in HBM.
            allow_input_fusion=[True, True],
        ),
        cost_estimate=pl.CostEstimate(
            flops=10 * b * ho * wo * lanes,
            transcendentals=0,
            bytes_accessed=in_bytes + out_bytes,
        ),
    )(x5, x5)


# ----------------------------------------------------------------------------
# Public wrappers
# ----------------------------------------------------------------------------
@jax.jit
def avg_pool_pad(x_nchw):
    """AvgPoolPad.forward (default stride=2) for an NCHW tensor (PyTorch layout)."""
    n, c, h, w = x_nchw.shape
    # TODO(synk): odd H/W and the stride=1 constructor variant need a dedicated
    # (non-parity) tiling; only the module's default stride=2 / even-size path
    # is implemented here.
    assert h % 2 == 0 and w % 2 == 0 and h >= 4 and w >= 4, (h, w)
    ho, wo = h // 2, w // 2
    lanes = n * c

    # Single layout pass: NCHW -> 2x2-parity planes with (n, c) folded into the
    # lane dim.  No separate zero-pad pass, no mask / reciprocal operands.
    x5 = x_nchw.reshape(lanes, ho, 2, wo, 2)
    x5 = jnp.transpose(x5, (2, 4, 1, 3, 0)).reshape(1, 4, ho, wo, lanes)

    out = _avg_pool_pad_core(x5, x_nchw.dtype)               # (1, ho, wo, n*c)
    return jnp.transpose(out.reshape(ho, wo, n, c), (2, 3, 0, 1))   # NCHW


@jax.jit
def avg_pool_pad_nhwc(x_nhwc):
    """Channels-last AvgPoolPad: NHWC in -> NHWC out.

    Preferred TPU entry point: the parity split keeps C in the lane dim (a
    cheap major-dim copy that allow_input_fusion lets XLA fold into the
    pallas_call) and the kernel output is returned directly, so none of the
    NCHW wrapper's lane-crossing transposes are paid.
    """
    n, h, w, c = x_nhwc.shape
    assert h % 2 == 0 and w % 2 == 0 and h >= 4 and w >= 4, (h, w)
    ho, wo = h // 2, w // 2

    x5 = x_nhwc.reshape(n, ho, 2, wo, 2, c)
    x5 = jnp.transpose(x5, (0, 2, 4, 1, 3, 5)).reshape(n, 4, ho, wo, c)
    return _avg_pool_pad_core(x5, x_nhwc.dtype)              # (n, ho, wo, c)


# ----------------------------------------------------------------------------
# Pure-XLA reference (literal translation of the PyTorch forward)
# ----------------------------------------------------------------------------
def _ref_avg_pool_pad(x_nchw):
    zp = jnp.pad(x_nchw, ((0, 0), (0, 0), (1, 0), (1, 0)))   # ZeroPad2d((1,0,1,0))
    win, strides = (1, 1, 3, 3), (1, 1, 2, 2)
    pad = ((0, 0), (0, 0), (1, 1), (1, 1))
    s = lax.reduce_window(zp, 0.0, lax.add, win, strides, pad)
    cnt = lax.reduce_window(jnp.ones_like(zp), 0.0, lax.add, win, strides, pad)
    return (s / cnt)[:, :, 1:, 1:]                           # count_include_pad=False; crop


# ----------------------------------------------------------------------------
if __name__ == "__main__":
    key = jax.random.PRNGKey(0)
    N, C, H, W = 2, 4, 16, 16
    x = jax.random.normal(key, (N, C, H, W), jnp.float32)

    ref = jax.block_until_ready(_ref_avg_pool_pad(x))

    # NCHW (module-faithful) path.
    out = jax.block_until_ready(avg_pool_pad(x))
    assert out.shape == (N, C, H // 2, W // 2), out.shape
    np.testing.assert_allclose(np.asarray(out), np.asarray(ref), rtol=1e-5, atol=1e-5)

    # Channels-last path (no wrapper transposes).
    out_nhwc = jax.block_until_ready(avg_pool_pad_nhwc(jnp.transpose(x, (0, 2, 3, 1))))
    np.testing.assert_allclose(np.asarray(jnp.transpose(out_nhwc, (0, 3, 1, 2))),
                               np.asarray(ref), rtol=1e-5, atol=1e-5)

    print("KERNEL_OK")
</pallas_src>

<mosaic_0001>
module attributes {stable_mosaic.version = 11 : i64} {
  func.func @_avg_pool_pad_kernel(%arg0: i32, %arg1: i32, %arg2: i32, %arg3: memref<1x4x4x8x8xf32, #tpu.memory_space<vmem>>, %arg4: memref<1x4x1x8x8xf32, #tpu.memory_space<vmem>>, %arg5: memref<1x4x8x8xf32, #tpu.memory_space<vmem>>) attributes {dimension_semantics = [#tpu.dimension_semantics<parallel>, #tpu.dimension_semantics<parallel>, #tpu.dimension_semantics<parallel>], iteration_bounds = array<i64: 1, 1, 2>, scalar_prefetch = 0 : i64, scratch_operands = 0 : i64, tpu.core_type = #tpu.core_type<tc>, window_params = [{transform_indices = @transform_0, window_bounds = array<i64: 1, 4, 4, 8, 8>}, {transform_indices = @transform_1, window_bounds = array<i64: 1, 4, 1, 8, 8>}, {transform_indices = @transform_2, window_bounds = array<i64: 1, 4, 8, 8>}]} {
    %c1_i32 = arith.constant 1 : i32
    %0 = arith.cmpi eq, %arg2, %c1_i32 : i32
    %c0 = arith.constant 0 : index
    %c0_0 = arith.constant 0 : index
    %c0_1 = arith.constant 0 : index
    %c0_2 = arith.constant 0 : index
    %c0_3 = arith.constant 0 : index
    %1 = vector.load %arg3[%c0, %c0_0, %c0_1, %c0_2, %c0_3] : memref<1x4x4x8x8xf32, #tpu.memory_space<vmem>>, vector<1x1x4x8x8xf32>
    %2 = vector.shape_cast %1 : vector<1x1x4x8x8xf32> to vector<4x8x8xf32>
    %c0_4 = arith.constant 0 : index
    %c1 = arith.constant 1 : index
    %c0_5 = arith.constant 0 : index
    %c0_6 = arith.constant 0 : index
    %c0_7 = arith.constant 0 : index
    %3 = vector.load %arg3[%c0_4, %c1, %c0_5, %c0_6, %c0_7] : memref<1x4x4x8x8xf32, #tpu.memory_space<vmem>>, vector<1x1x4x8x8xf32>
    %4 = vector.shape_cast %3 : vector<1x1x4x8x8xf32> to vector<4x8x8xf32>
    %5 = arith.addf %2, %4 : vector<4x8x8xf32>
    %c0_8 = arith.constant 0 : index
    %c2 = arith.constant 2 : index
    %c0_9 = arith.constant 0 : index
    %c0_10 = arith.constant 0 : index
    %c0_11 = arith.constant 0 : index
    %6 = vector.load %arg3[%c0_8, %c2, %c0_9, %c0_10, %c0_11] : memref<1x4x4x8x8xf32, #tpu.memory_space<vmem>>, vector<1x1x4x8x8xf32>
    %7 = vector.shape_cast %6 : vector<1x1x4x8x8xf32> to vector<4x8x8xf32>
    %8 = arith.addf %5, %7 : vector<4x8x8xf32>
    %c0_12 = arith.constant 0 : index
    %c3 = arith.constant 3 : index
    %c0_13 = arith.constant 0 : index
    %c0_14 = arith.constant 0 : index
    %c0_15 = arith.constant 0 : index
    %9 = vector.load %arg3[%c0_12, %c3, %c0_13, %c0_14, %c0_15] : memref<1x4x4x8x8xf32, #tpu.memory_space<vmem>>, vector<1x1x4x8x8xf32>
    %10 = vector.shape_cast %9 : vector<1x1x4x8x8xf32> to vector<4x8x8xf32>
    %11 = arith.addf %8, %10 : vector<4x8x8xf32>
    %c0_16 = arith.constant 0 : index
    %c0_17 = arith.constant 0 : index
    %c0_18 = arith.constant 0 : index
    %c0_19 = arith.constant 0 : index
    %c0_20 = arith.constant 0 : index
    %12 = vector.load %arg4[%c0_16, %c0_17, %c0_18, %c0_19, %c0_20] : memref<1x4x1x8x8xf32, #tpu.memory_space<vmem>>, vector<1x1x1x8x8xf32>
    %13 = vector.shape_cast %12 : vector<1x1x1x8x8xf32> to vector<1x8x8xf32>
    %cst = arith.constant 0.000000e+00 : f32
    %14 = vector.broadcast %cst : f32 to vector<1x8x8xf32>
    %15 = arith.select %0, %14, %13 : vector<1x8x8xf32>
    %c0_21 = arith.constant 0 : index
    %c1_22 = arith.constant 1 : index
    %c0_23 = arith.constant 0 : index
    %c0_24 = arith.constant 0 : index
    %c0_25 = arith.constant 0 : index
    %16 = vector.load %arg4[%c0_21, %c1_22, %c0_23, %c0_24, %c0_25] : memref<1x4x1x8x8xf32, #tpu.memory_space<vmem>>, vector<1x1x1x8x8xf32>
    %17 = vector.shape_cast %16 : vector<1x1x1x8x8xf32> to vector<1x8x8xf32>
    %cst_26 = arith.constant 0.000000e+00 : f32
    %18 = vector.broadcast %cst_26 : f32 to vector<1x8x8xf32>
    %19 = arith.select %0, %18, %17 : vector<1x8x8xf32>
    %c0_27 = arith.constant 0 : index
    %c0_28 = arith.constant 0 : index
    %c1_29 = arith.constant 1 : index
    %c0_30 = arith.constant 0 : index
    %c0_31 = arith.constant 0 : index
    %20 = vector.load %arg3[%c0_27, %c0_28, %c1_29, %c0_30, %c0_31] : memref<1x4x4x8x8xf32, #tpu.memory_space<vmem>>, vector<1x1x3x8x8xf32>
    %21 = vector.shape_cast %20 : vector<1x1x3x8x8xf32> to vector<3x8x8xf32>
    %22 = tpu.concatenate %21, %15 in 0 : vector<3x8x8xf32>, vector<1x8x8xf32> -> vector<4x8x8xf32>
    %c0_32 = arith.constant 0 : index
    %c1_33 = arith.constant 1 : index
    %c1_34 = arith.constant 1 : index
    %c0_35 = arith.constant 0 : index
    %c0_36 = arith.constant 0 : index
    %23 = vector.load %arg3[%c0_32, %c1_33, %c1_34, %c0_35, %c0_36] : memref<1x4x4x8x8xf32, #tpu.memory_space<vmem>>, vector<1x1x3x8x8xf32>
    %24 = vector.shape_cast %23 : vector<1x1x3x8x8xf32> to vector<3x8x8xf32>
    %25 = tpu.concatenate %24, %19 in 0 : vector<3x8x8xf32>, vector<1x8x8xf32> -> vector<4x8x8xf32>
    %26 = arith.addf %11, %22 : vector<4x8x8xf32>
    %27 = arith.addf %26, %25 : vector<4x8x8xf32>
    %c0_37 = arith.constant 0 : index
    %c0_38 = arith.constant 0 : index
    %c0_39 = arith.constant 0 : index
    %c1_40 = arith.constant 1 : index
    %c0_41 = arith.constant 0 : index
    %28 = vector.load %arg3[%c0_37, %c0_38, %c0_39, %c1_40, %c0_41] : memref<1x4x4x8x8xf32, #tpu.memory_space<vmem>>, vector<1x1x4x7x8xf32>
    %29 = vector.shape_cast %28 : vector<1x1x4x7x8xf32> to vector<4x7x8xf32>
    %c0_42 = arith.constant 0 : index
    %c2_43 = arith.constant 2 : index
    %c0_44 = arith.constant 0 : index
    %c1_45 = arith.constant 1 : index
    %c0_46 = arith.constant 0 : index
    %30 = vector.load %arg3[%c0_42, %c2_43, %c0_44, %c1_45, %c0_46] : memref<1x4x4x8x8xf32, #tpu.memory_space<vmem>>, vector<1x1x4x7x8xf32>
    %31 = vector.shape_cast %30 : vector<1x1x4x7x8xf32> to vector<4x7x8xf32>
    %32 = arith.addf %29, %31 : vector<4x7x8xf32>
    %33 = vector.extract_strided_slice %22 {offsets = [0, 1, 0], sizes = [4, 7, 8], strides = [1, 1, 1]} : vector<4x8x8xf32> to vector<4x7x8xf32>
    %34 = arith.addf %32, %33 : vector<4x7x8xf32>
    %cst_47 = arith.constant 0.000000e+00 : f32
    %35 = vector.broadcast %cst_47 : f32 to vector<4x1x8xf32>
    %36 = tpu.concatenate %34, %35 in 1 : vector<4x7x8xf32>, vector<4x1x8xf32> -> vector<4x8x8xf32>
    %37 = arith.addf %27, %36 : vector<4x8x8xf32>
    %38 = tpu.iota {dimensions = array<i32: 0>} : vector<4x1x1xi32>
    %39 = tpu.iota {dimensions = array<i32: 1>} : vector<1x8x1xi32>
    %c3_i32 = arith.constant 3 : i32
    %40 = vector.broadcast %c3_i32 : i32 to vector<4x1x1xi32>
    %41 = arith.cmpi eq, %38, %40 : vector<4x1x1xi32>
    %42 = vector.broadcast %0 : i1 to vector<4x1x1xi1>
    %43 = arith.andi %42, %41 : vector<4x1x1xi1>
    %cst_48 = arith.constant 1.500000e+00 : f32
    %cst_49 = arith.constant 1.000000e+00 : f32
    %44 = vector.broadcast %cst_48 : f32 to vector<4x1x1xf32>
    %45 = vector.broadcast %cst_49 : f32 to vector<4x1x1xf32>
    %46 = arith.select %43, %44, %45 : vector<4x1x1xi1>, vector<4x1x1xf32>
    %c7_i32 = arith.constant 7 : i32
    %47 = vector.broadcast %c7_i32 : i32 to vector<1x8x1xi32>
    %48 = arith.cmpi eq, %39, %47 : vector<1x8x1xi32>
    %cst_50 = arith.constant 1.500000e+00 : f32
    %cst_51 = arith.constant 1.000000e+00 : f32
    %49 = vector.broadcast %cst_50 : f32 to vector<1x8x1xf32>
    %50 = vector.broadcast %cst_51 : f32 to vector<1x8x1xf32>
    %51 = arith.select %48, %49, %50 : vector<1x8x1xi1>, vector<1x8x1xf32>
    %52 = vector.broadcast %46 : vector<4x1x1xf32> to vector<4x8x1xf32>
    %53 = vector.broadcast %51 : vector<1x8x1xf32> to vector<4x8x1xf32>
    %54 = arith.mulf %52, %53 : vector<4x8x1xf32>
    %cst_52 = arith.constant 0.111111112 : f32
    %55 = vector.broadcast %cst_52 : f32 to vector<4x8x1xf32>
    %56 = arith.mulf %54, %55 : vector<4x8x1xf32>
    %57 = vector.broadcast %56 : vector<4x8x1xf32> to vector<4x8x8xf32>
    %58 = arith.mulf %37, %57 : vector<4x8x8xf32>
    %c0_53 = arith.constant 0 : index
    %c0_54 = arith.constant 0 : index
    %c0_55 = arith.constant 0 : index
    %c0_56 = arith.constant 0 : index
    %59 = vector.load %arg5[%c0_53, %c0_54, %c0_55, %c0_56] : memref<1x4x8x8xf32, #tpu.memory_space<vmem>>, vector<1x4x8x8xf32>
    %60 = vector.shape_cast %59 : vector<1x4x8x8xf32> to vector<4x8x8xf32>
    %61 = vector.shape_cast %58 : vector<4x8x8xf32> to vector<1x4x8x8xf32>
    tpu.vector_store %arg5[%c0_53, %c0_54, %c0_55, %c0_56], %61 {strides = array<i32>} : memref<1x4x8x8xf32, #tpu.memory_space<vmem>>, vector<1x4x8x8xf32>,
    return
  }
  func.func @transform_0(%arg0: i32, %arg1: i32, %arg2: i32) -> (i32, i32, i32, i32, i32) {
    %c0_i32 = arith.constant 0 : i32
    %c0_i32_0 = arith.constant 0 : i32
    %c0_i32_1 = arith.constant 0 : i32
    return %arg0, %c0_i32, %arg2, %c0_i32_0, %arg1 : i32, i32, i32, i32, i32
  }
  func.func @transform_1(%arg0: i32, %arg1: i32, %arg2: i32) -> (i32, i32, i32, i32, i32) {
    %c1_i32 = arith.constant 1 : i32
    %0 = arith.addi %arg2, %c1_i32 : i32
    %c4_i32 = arith.constant 4 : i32
    %1 = arith.muli %0, %c4_i32 : i32
    %c8_i32 = arith.constant 8 : i32
    %c0_i32 = arith.constant 0 : i32
    %2 = arith.cmpi eq, %c8_i32, %c0_i32 : i32
    %c1_i32_0 = arith.constant 1 : i32
    %3 = arith.select %2, %c1_i32_0, %c8_i32 : i32
    %4 = arith.remsi %1, %3 : i32
    %c0_i32_1 = arith.constant 0 : i32
    %5 = arith.cmpi ne, %4, %c0_i32_1 : i32
    %c0_i32_2 = arith.constant 0 : i32
    %6 = arith.cmpi slt, %4, %c0_i32_2 : i32
    %c0_i32_3 = arith.constant 0 : i32
    %7 = arith.cmpi slt, %3, %c0_i32_3 : i32
    %8 = arith.xori %6, %7 : i1
    %9 = arith.andi %8, %5 : i1
    %10 = arith.addi %4, %3 : i32
    %11 = arith.select %9, %10, %4 : i32
    %c0_i32_4 = arith.constant 0 : i32
    %c0_i32_5 = arith.constant 0 : i32
    %c0_i32_6 = arith.constant 0 : i32
    return %arg0, %c0_i32_4, %11, %c0_i32_5, %arg1 : i32, i32, i32, i32, i32
  }
  func.func @transform_2(%arg0: i32, %arg1: i32, %arg2: i32) -> (i32, i32, i32, i32) {
    %c0_i32 = arith.constant 0 : i32
    %c0_i32_0 = arith.constant 0 : i32
    return %arg0, %arg2, %c0_i32, %arg1 : i32, i32, i32, i32
  }
}

</mosaic_0001>

<llo_original>
// kernel: avg_pool_pad.2
$region0: #{avg_pool_pad.2}
  #allocation0 [shape = 'u32[]', space=smem, size = 0x4, offset = 0x4, fixed_abs, tag = 'smem constant byte address 0x4 - core index']
  #allocation1 [shape = 'u32[144,128]{1,0:T(1,128)}', space=vmem, size = 0x12000, scoped, tag = 'internal scratch']
  %s0 = inlined_call_operand.vmem [shape: f32[1,4,8,8,8], index: 0, kind: input, shape index: {}]
  %s1 = inlined_call_operand.vmem [shape: f32[1,8,8,8], index: 1, kind: output, shape index: {}]
  %s2 = sld [smem:[#allocation0]]
  $region117: #{avg_pool_pad.2} parent=0
    _
  %s4 = ssub.s32 1, %s2
  %s5 = scalar_select 0, %s4, %s2
  $region1: #{avg_pool_pad.2} parent=0
    #allocation2 [shape = 'u8[131072]{0}', space=vmem, size = 0x20000, scoped, tag = 'input window, operand 1']
    #allocation3 [shape = 'u8[32768]{0}', space=vmem, size = 0x8000, scoped, tag = 'input window, operand 1']
    loop: start=0, step=1, limit=4
    $region2: #{avg_pool_pad.2} parent=1 // loop_pre_header
      _
    $region3: #{avg_pool_pad.2} parent=1 // loop_header
      %s7 = sphi 0, %s11
      %p8 = scmp.ge.s32.totalorder %s7, 4
      %s14 = sphi 0, %s33
      %s15 = sphi 0, %s29
      %s16 = sphi 0, %s25
      %s17 = sphi 0, %s14
      %s18 = sphi 0, %s15
      %s19 = sphi 0, %s16
      %s20 = sphi 0, %s17
      %s21 = sphi 0, %s18
      %s22 = sphi 0, %s19
      %s40 = sphi 0, %s42
      %s43 = sphi 0, %s40
      %s44 = sphi 0, %s43
      %s60 = sphi 0, %s44
      %s98 = sphi 0, %s100
      %s101 = sphi 0, %s98
      %s102 = sphi 0, %s101
      %s118 = sphi 0, %s102
      %s128 = sphi 0, %s130
      %s131 = sphi 0, %s128
      %s132 = sphi 0, %s131
      %s148 = sphi 0, %s132
    $region4: #{avg_pool_pad.2} parent=1 // loop_header_branch
      %10 = sbr.rel (%p8) target = $region8
    $region5: #{avg_pool_pad.2} parent=1 // loop_body
      %s12 = ssub.s32 %s7, 1
      %s13 = ssub.s32 %s7, 2
      %s23 = sadd.s32 1, %s16
      %p24 = scmp.ge.s32.totalorder %s23, 2
      %s25 = scalar_select %p24, 0, %s23
      %s26 = sadd.s32 1, %s15
      %s27 = scalar_select %p24, %s26, %s15
      %p28 = scmp.ge.s32.totalorder %s27, 1
      %s29 = scalar_select %p28, 0, %s27
      %s30 = sadd.s32 1, %s14
      %s31 = scalar_select %p28, %s30, %s14
      %p32 = scmp.ge.s32.totalorder %s31, 1
      %s33 = scalar_select %p32, 0, %s31
      %s34 = ssub.s32 %s14, %s33
      %s35 = ssub.s32 %s16, %s25
      %s36 = sor.u32 %s34, %s35
      %s37 = ssub.s32 %s15, %s29
      %s38 = sor.u32 %s36, %s37
      %p39 = scmp.eq.s32.totalorder %s38, 0
      %s41 = sadd.s32 %s40, 1
      %s42 = scalar_select %p39, %s40, %s41
      %p45 = pneg %p39
      %p46 = scmp.eq.s32.totalorder %s7, 1
      %p47 = por %p45, %p46
      %p48 = scmp.ne.s32.totalorder %s40, %s43
      %p49 = scmp.eq.s32.totalorder %s7, 0
      %p50 = por %p48, %p49
      %p51 = scmp.ne.s32.totalorder %s40, %s43
      %p52 = scmp.eq.s32.totalorder %s12, 1
      %p53 = por %p51, %p52
      %p54 = scmp.ne.s32.totalorder %s43, %s44
      %p55 = scmp.eq.s32.totalorder %s12, 0
      %p56 = por %p54, %p55
      %p57 = scmp.ne.s32.totalorder %s43, %s44
      %p58 = scmp.eq.s32.totalorder %s13, 1
      %p59 = por %p57, %p58
      %p61 = scmp.ne.s32.totalorder %s44, %s60
      %p62 = scmp.eq.s32.totalorder %s13, 0
      %p63 = por %p61, %p62
      %s64 = sadd.s32 %s16, 1
      %s65 = smul.u32 %s64, 4
      %p66 = scmp.lt.s32.totalorder %s65, 0
      %s67 = ssub.s32 0, %s65
      %s68 = scalar_select %p66, %s67, %s65
      %s69 = sand.u32 %s68, 7
      %s70 = ssub.s32 0, %s69
      %s71 = scalar_select %p66, %s70, %s69
      %p72 = scmp.ne.s32.totalorder %s71, 0
      %p73 = scmp.lt.s32.totalorder %s71, 0
      %p74 = pnand %p73, %p72
      %p75 = pneg %p74
      %s76 = sadd.s32 %s71, 8
      %s77 = scalar_select %p75, %s76, %s71
      %s78 = sadd.s32 %s25, 1
      %s79 = smul.u32 %s78, 4
      %p80 = scmp.lt.s32.totalorder %s79, 0
      %s81 = ssub.s32 0, %s79
      %s82 = scalar_select %p80, %s81, %s79
      %s83 = sand.u32 %s82, 7
      %s84 = ssub.s32 0, %s83
      %s85 = scalar_select %p80, %s84, %s83
      %p86 = scmp.ne.s32.totalorder %s85, 0
      %p87 = scmp.lt.s32.totalorder %s85, 0
      %p88 = pnand %p87, %p86
      %p89 = pneg %p88
      %s90 = sadd.s32 %s85, 8
      %s91 = scalar_select %p89, %s90, %s85
      %s92 = ssub.s32 %s14, %s33
      %s93 = ssub.s32 %s77, %s91
      %s94 = sor.u32 %s92, %s93
      %s95 = ssub.s32 %s15, %s29
      %s96 = sor.u32 %s94, %s95
      %p97 = scmp.eq.s32.totalorder %s96, 0
      %s99 = sadd.s32 %s98, 1
      %s100 = scalar_select %p97, %s98, %s99
      %p103 = pneg %p97
      %p104 = scmp.eq.s32.totalorder %s7, 1
      %p105 = por %p103, %p104
      %p106 = scmp.ne.s32.totalorder %s98, %s101
      %p107 = scmp.eq.s32.totalorder %s7, 0
      %p108 = por %p106, %p107
      %p109 = scmp.ne.s32.totalorder %s98, %s101
      %p110 = scmp.eq.s32.totalorder %s12, 1
      %p111 = por %p109, %p110
      %p112 = scmp.ne.s32.totalorder %s101, %s102
      %p113 = scmp.eq.s32.totalorder %s12, 0
      %p114 = por %p112, %p113
      %p115 = scmp.ne.s32.totalorder %s101, %s102
      %p116 = scmp.eq.s32.totalorder %s13, 1
      %p117 = por %p115, %p116
      %p119 = scmp.ne.s32.totalorder %s102, %s118
      %p120 = scmp.eq.s32.totalorder %s13, 0
      %p121 = por %p119, %p120
      %s122 = ssub.s32 %s14, %s33
      %s123 = ssub.s32 %s16, %s25
      %s124 = sor.u32 %s122, %s123
      %s125 = ssub.s32 %s15, %s29
      %s126 = sor.u32 %s124, %s125
      %p127 = scmp.eq.s32.totalorder %s126, 0
      %s129 = sadd.s32 %s128, 1
      %s130 = scalar_select %p127, %s128, %s129
      %p133 = pneg %p127
      %p134 = scmp.eq.s32.totalorder %s7, 1
      %p135 = por %p133, %p134
      %p136 = scmp.ne.s32.totalorder %s128, %s131
      %p137 = scmp.eq.s32.totalorder %s7, 0
      %p138 = por %p136, %p137
      %p139 = scmp.ne.s32.totalorder %s128, %s131
      %p140 = scmp.eq.s32.totalorder %s12, 1
      %p141 = por %p139, %p140
      %p142 = scmp.ne.s32.totalorder %s131, %s132
      %p143 = scmp.eq.s32.totalorder %s12, 0
      %p144 = por %p142, %p143
      %p145 = scmp.ne.s32.totalorder %s131, %s132
      %p146 = scmp.eq.s32.totalorder %s13, 1
      %p147 = por %p145, %p146
      %p149 = scmp.ne.s32.totalorder %s132, %s148
      %p150 = scmp.eq.s32.totalorder %s13, 0
      %p151 = por %p149, %p150
      %p152 = scmp.le.s32.totalorder 1, %s7
      %p153 = scmp.lt.s32.totalorder %s7, 3
      %p154 = pnand %p152, %p153
      %p155 = pneg %p154
      // Predicated region
      $region9: #{avg_pool_pad.2} parent=5 // pred_check
        _
      $region10: #{avg_pool_pad.2} parent=5 // pred_check_branch
        %157 = sbr.rel (%p154) target = $region12
      $region11: #{avg_pool_pad.2} parent=5 // pred_region
        %s158 = ssub.s32 %s7, 1
      $region12: #{avg_pool_pad.2} parent=5 // pred_fallthru
        _
      %p159 = scmp.lt.s32.totalorder %s7, 2
      // Predicated region
      $region13: #{avg_pool_pad.2} parent=5 // pred_check
        %p160 = pneg %p159
      $region14: #{avg_pool_pad.2} parent=5 // pred_check_branch
        %162 = sbr.rel (%p160) target = $region16
      $region15: #{avg_pool_pad.2} parent=5 // pred_region
        // Predicated region
        $region17: #{avg_pool_pad.2} parent=15 // pred_check
          %p163 = pneg %p50
        $region18: #{avg_pool_pad.2} parent=15 // pred_check_branch
          %165 = sbr.rel (%p163) target = $region20
        $region19: #{avg_pool_pad.2} parent=15 // pred_region
          %s166 = sand.u32 %s40, 1
          %s167 = sand.u32 %s40, 1
          %s168 = smul.addr %s167, 128
          %s169 = scalar_lea.vmem [#allocation2], %s168
          %s170 = smul.u32 4, %s16
          %s171 = sadd.s32 %s15, %s170
          %s172 = smul.addr %s14, 32
          %s173 = sadd.s32 %s171, %s172
          %s174 = smul.addr %s173, 8
          %s175 = scalar_lea.vmem %s0, %s174
          // Predicated region
          $region21: #{avg_pool_pad.2} parent=19 // pred_check
            _
          $region22: #{avg_pool_pad.2} parent=19 // pred_check_branch
            %177 = sbr.rel (0) target = $region24
          $region23: #{avg_pool_pad.2} parent=19 // pred_region
            // Predicated region
            $region25: #{avg_pool_pad.2} parent=23 // pred_check
              _
            $region26: #{avg_pool_pad.2} parent=23 // pred_check_branch
              %179 = sbr.rel (0) target = $region28
            $region27: #{avg_pool_pad.2} parent=23 // pred_region
              // Predicated region
              $region40: #{avg_pool_pad.2} parent=27 // pred_check
                _
              $region41: #{avg_pool_pad.2} parent=27 // pred_check_branch
                %224 = sbr.rel (0) target = $region43
              $region42: #{avg_pool_pad.2} parent=27 // pred_region
                loop: start=0, step=1, limit=1
                $region44: #{avg_pool_pad.2} parent=42 // loop_pre_header
                  _
                $region45: #{avg_pool_pad.2} parent=42 // loop_header
                  %s226 = sphi 0, %s230
                  %p227 = scmp.ge.s32.totalorder %s226, 1
                  %s231 = sphi %s175, %s175
                  %s232 = sphi %s169, %s169
                $region46: #{avg_pool_pad.2} parent=42 // loop_header_branch
                  %229 = sbr.rel (%p227) target = $region50
                $region47: #{avg_pool_pad.2} parent=42 // loop_body
                  %v233 = vld [vmem:[%s231] sm:$0xff]
                  %234 = vst [vmem:[%s232] sm:$0xff] %v233
                  %v235 = vld [vmem:[%s231 + $0x8] sm:$0xff]
                  %236 = vst [vmem:[%s232 + $0x8] sm:$0xff] %v235
                  %v237 = vld [vmem:[%s231 + $0x10] sm:$0xff]
                  %238 = vst [vmem:[%s232 + $0x10] sm:$0xff] %v237
                  %v239 = vld [vmem:[%s231 + $0x18] sm:$0xff]
                  %240 = vst [vmem:[%s232 + $0x18] sm:$0xff] %v239
                  %v241 = vld [vmem:[%s231 + $0x40] sm:$0xff]
                  %242 = vst [vmem:[%s232 + $0x20] sm:$0xff] %v241
                  %v243 = vld [vmem:[%s231 + $0x48] sm:$0xff]
                  %244 = vst [vmem:[%s232 + $0x28] sm:$0xff] %v243
                  %v245 = vld [vmem:[%s231 + $0x50] sm:$0xff]
                  %246 = vst [vmem:[%s232 + $0x30] sm:$0xff] %v245
                  %v247 = vld [vmem:[%s231 + $0x58] sm:$0xff]
                  %248 = vst [vmem:[%s232 + $0x38] sm:$0xff] %v247
                  %v249 = vld [vmem:[%s231 + $0x80] sm:$0xff]
                  %250 = vst [vmem:[%s232 + $0x40] sm:$0xff] %v249
                  %v251 = vld [vmem:[%s231 + $0x88] sm:$0xff]
                  %252 = vst [vmem:[%s232 + $0x48] sm:$0xff] %v251
                  %v253 = vld [vmem:[%s231 + $0x90] sm:$0xff]
                  %254 = vst [vmem:[%s232 + $0x50] sm:$0xff] %v253
                  %v255 = vld [vmem:[%s231 + $0x98] sm:$0xff]
                  %256 = vst [vmem:[%s232 + $0x58] sm:$0xff] %v255
                  %v257 = vld [vmem:[%s231 + $0xc0] sm:$0xff]
                  %258 = vst [vmem:[%s232 + $0x60] sm:$0xff] %v257
                  %v259 = vld [vmem:[%s231 + $0xc8] sm:$0xff]
                  %260 = vst [vmem:[%s232 + $0x68] sm:$0xff] %v259
                  %v261 = vld [vmem:[%s231 + $0xd0] sm:$0xff]
                  %262 = vst [vmem:[%s232 + $0x70] sm:$0xff] %v261
                  %v263 = vld [vmem:[%s231 + $0xd8] sm:$0xff]
                  %264 = vst [vmem:[%s232 + $0x78] sm:$0xff] %v263
                $region48: #{avg_pool_pad.2} parent=42 // loop_footer
                  %s230 = sadd.s32 1, %s226
                $region49: #{avg_pool_pad.2} parent=42 // loop_footer_branch
                  %225 = sbr.rel target = $region45
                $region50: #{avg_pool_pad.2} parent=42 // loop_exit
                  _
              $region43: #{avg_pool_pad.2} parent=27 // pred_fallthru
                _
              // Predicated region
              $region51: #{avg_pool_pad.2} parent=27 // pred_check
                _
              $region52: #{avg_pool_pad.2} parent=27 // pred_check_branch
                %266 = sbr.rel target = $region54
              $region53: #{avg_pool_pad.2} parent=27 // pred_region
                _
              $region54: #{avg_pool_pad.2} parent=27 // pred_fallthru
                _
            $region28: #{avg_pool_pad.2} parent=23 // pred_fallthru
              _
            // Predicated region
            $region29: #{avg_pool_pad.2} parent=23 // pred_check
              _
            $region30: #{avg_pool_pad.2} parent=23 // pred_check_branch
              %181 = sbr.rel target = $region32
            $region31: #{avg_pool_pad.2} parent=23 // pred_region
              loop: start=0, step=1, limit=1
              $region33: #{avg_pool_pad.2} parent=31 // loop_pre_header
                _
              $region34: #{avg_pool_pad.2} parent=31 // loop_header
                %s184 = sphi 0, %s188
                %p185 = scmp.ge.s32.totalorder %s184, 1
                %s189 = sphi %s175, %s175
                %s190 = sphi %s169, %s169
              $region35: #{avg_pool_pad.2} parent=31 // loop_header_branch
                %187 = sbr.rel (%p185) target = $region39
              $region36: #{avg_pool_pad.2} parent=31 // loop_body
                %v191 = vld [vmem:[%s189] sm:$0xff]
                %192 = vst [vmem:[%s190] sm:$0xff] %v191
                %v193 = vld [vmem:[%s189 + $0x8] sm:$0xff]
                %194 = vst [vmem:[%s190 + $0x8] sm:$0xff] %v193
                %v195 = vld [vmem:[%s189 + $0x10] sm:$0xff]
                %196 = vst [vmem:[%s190 + $0x10] sm:$0xff] %v195
                %v197 = vld [vmem:[%s189 + $0x18] sm:$0xff]
                %198 = vst [vmem:[%s190 + $0x18] sm:$0xff] %v197
                %v199 = vld [vmem:[%s189 + $0x40] sm:$0xff]
                %200 = vst [vmem:[%s190 + $0x20] sm:$0xff] %v199
                %v201 = vld [vmem:[%s189 + $0x48] sm:$0xff]
                %202 = vst [vmem:[%s190 + $0x28] sm:$0xff] %v201
                %v203 = vld [vmem:[%s189 + $0x50] sm:$0xff]
                %204 = vst [vmem:[%s190 + $0x30] sm:$0xff] %v203
                %v205 = vld [vmem:[%s189 + $0x58] sm:$0xff]
                %206 = vst [vmem:[%s190 + $0x38] sm:$0xff] %v205
                %v207 = vld [vmem:[%s189 + $0x80] sm:$0xff]
                %208 = vst [vmem:[%s190 + $0x40] sm:$0xff] %v207
                %v209 = vld [vmem:[%s189 + $0x88] sm:$0xff]
                %210 = vst [vmem:[%s190 + $0x48] sm:$0xff] %v209
                %v211 = vld [vmem:[%s189 + $0x90] sm:$0xff]
                %212 = vst [vmem:[%s190 + $0x50] sm:$0xff] %v211
                %v213 = vld [vmem:[%s189 + $0x98] sm:$0xff]
                %214 = vst [vmem:[%s190 + $0x58] sm:$0xff] %v213
                %v215 = vld [vmem:[%s189 + $0xc0] sm:$0xff]
                %216 = vst [vmem:[%s190 + $0x60] sm:$0xff] %v215
                %v217 = vld [vmem:[%s189 + $0xc8] sm:$0xff]
                %218 = vst [vmem:[%s190 + $0x68] sm:$0xff] %v217
                %v219 = vld [vmem:[%s189 + $0xd0] sm:$0xff]
                %220 = vst [vmem:[%s190 + $0x70] sm:$0xff] %v219
                %v221 = vld [vmem:[%s189 + $0xd8] sm:$0xff]
                %222 = vst [vmem:[%s190 + $0x78] sm:$0xff] %v221
              $region37: #{avg_pool_pad.2} parent=31 // loop_footer
                %s188 = sadd.s32 1, %s184
              $region38: #{avg_pool_pad.2} parent=31 // loop_footer_branch
                %183 = sbr.rel target = $region34
              $region39: #{avg_pool_pad.2} parent=31 // loop_exit
                _
            $region32: #{avg_pool_pad.2} parent=23 // pred_fallthru
              _
          $region24: #{avg_pool_pad.2} parent=19 // pred_fallthru
            _
          %267 = vnop
        $region20: #{avg_pool_pad.2} parent=15 // pred_fallthru
          _
        // Predicated region
        $region55: #{avg_pool_pad.2} parent=15 // pred_check
          %p268 = pneg %p108
        $region56: #{avg_pool_pad.2} parent=15 // pred_check_branch
          %270 = sbr.rel (%p268) target = $region58
        $region57: #{avg_pool_pad.2} parent=15 // pred_region
          %s271 = sand.u32 %s98, 1
          %s272 = sand.u32 %s98, 1
          %s273 = smul.addr %s272, 32
          %s274 = scalar_lea.vmem [#allocation3], %s273
          %s275 = sadd.s32 %s16, 1
          %s276 = smul.u32 %s275, 4
          %p277 = scmp.lt.s32.totalorder %s276, 0
          %s278 = ssub.s32 0, %s276
          %s279 = scalar_select %p277, %s278, %s276
          %s280 = sand.u32 %s279, 7
          %s281 = ssub.s32 0, %s280
          %s282 = scalar_select %p277, %s281, %s280
          %p283 = scmp.ne.s32.totalorder %s282, 0
          %p284 = scmp.lt.s32.totalorder %s282, 0
          %p285 = pnand %p284, %p283
          %p286 = pneg %p285
          %s287 = sadd.s32 %s282, 8
          %s288 = scalar_select %p286, %s287, %s282
          %s289 = sadd.s32 %s15, %s288
          %s290 = smul.addr %s14, 32
          %s291 = sadd.s32 %s289, %s290
          %s292 = smul.addr %s291, 8
          %s293 = scalar_lea.vmem %s0, %s292
          // Predicated region
          $region59: #{avg_pool_pad.2} parent=57 // pred_check
            _
          $region60: #{avg_pool_pad.2} parent=57 // pred_check_branch
            %295 = sbr.rel (0) target = $region62
          $region61: #{avg_pool_pad.2} parent=57 // pred_region
            // Predicated region
            $region63: #{avg_pool_pad.2} parent=61 // pred_check
              _
            $region64: #{avg_pool_pad.2} parent=61 // pred_check_branch
              %297 = sbr.rel (0) target = $region66
            $region65: #{avg_pool_pad.2} parent=61 // pred_region
              // Predicated region
              $region78: #{avg_pool_pad.2} parent=65 // pred_check
                _
              $region79: #{avg_pool_pad.2} parent=65 // pred_check_branch
                %318 = sbr.rel (0) target = $region81
              $region80: #{avg_pool_pad.2} parent=65 // pred_region
                loop: start=0, step=1, limit=1
                $region82: #{avg_pool_pad.2} parent=80 // loop_pre_header
                  _
                $region83: #{avg_pool_pad.2} parent=80 // loop_header
                  %s320 = sphi 0, %s324
                  %p321 = scmp.ge.s32.totalorder %s320, 1
                  %s325 = sphi %s293, %s293
                  %s326 = sphi %s274, %s274
                $region84: #{avg_pool_pad.2} parent=80 // loop_header_branch
                  %323 = sbr.rel (%p321) target = $region88
                $region85: #{avg_pool_pad.2} parent=80 // loop_body
                  %v327 = vld [vmem:[%s325] sm:$0xff]
                  %328 = vst [vmem:[%s326] sm:$0xff] %v327
                  %v329 = vld [vmem:[%s325 + $0x40] sm:$0xff]
                  %330 = vst [vmem:[%s326 + $0x8] sm:$0xff] %v329
                  %v331 = vld [vmem:[%s325 + $0x80] sm:$0xff]
                  %332 = vst [vmem:[%s326 + $0x10] sm:$0xff] %v331
                  %v333 = vld [vmem:[%s325 + $0xc0] sm:$0xff]
                  %334 = vst [vmem:[%s326 + $0x18] sm:$0xff] %v333
                $region86: #{avg_pool_pad.2} parent=80 // loop_footer
                  %s324 = sadd.s32 1, %s320
                $region87: #{avg_pool_pad.2} parent=80 // loop_footer_branch
                  %319 = sbr.rel target = $region83
                $region88: #{avg_pool_pad.2} parent=80 // loop_exit
                  _
              $region81: #{avg_pool_pad.2} parent=65 // pred_fallthru
                _
              // Predicated region
              $region89: #{avg_pool_pad.2} parent=65 // pred_check
                _
              $region90: #{avg_pool_pad.2} parent=65 // pred_check_branch
                %336 = sbr.rel target = $region92
              $region91: #{avg_pool_pad.2} parent=65 // pred_region
                _
              $region92: #{avg_pool_pad.2} parent=65 // pred_fallthru
                _
            $region66: #{avg_pool_pad.2} parent=61 // pred_fallthru
              _
            // Predicated region
            $region67: #{avg_pool_pad.2} parent=61 // pred_check
              _
            $region68: #{avg_pool_pad.2} parent=61 // pred_check_branch
              %299 = sbr.rel target = $region70
            $region69: #{avg_pool_pad.2} parent=61 // pred_region
              loop: start=0, step=1, limit=1
              $region71: #{avg_pool_pad.2} parent=69 // loop_pre_header
                _
              $region72: #{avg_pool_pad.2} parent=69 // loop_header
                %s302 = sphi 0, %s306
                %p303 = scmp.ge.s32.totalorder %s302, 1
                %s307 = sphi %s293, %s293
                %s308 = sphi %s274, %s274
              $region73: #{avg_pool_pad.2} parent=69 // loop_header_branch
                %305 = sbr.rel (%p303) target = $region77
              $region74: #{avg_pool_pad.2} parent=69 // loop_body
                %v309 = vld [vmem:[%s307] sm:$0xff]
                %310 = vst [vmem:[%s308] sm:$0xff] %v309
                %v311 = vld [vmem:[%s307 + $0x40] sm:$0xff]
                %312 = vst [vmem:[%s308 + $0x8] sm:$0xff] %v311
                %v313 = vld [vmem:[%s307 + $0x80] sm:$0xff]
                %314 = vst [vmem:[%s308 + $0x10] sm:$0xff] %v313
                %v315 = vld [vmem:[%s307 + $0xc0] sm:$0xff]
                %316 = vst [vmem:[%s308 + $0x18] sm:$0xff] %v315
              $region75: #{avg_pool_pad.2} parent=69 // loop_footer
                %s306 = sadd.s32 1, %s302
              $region76: #{avg_pool_pad.2} parent=69 // loop_footer_branch
                %301 = sbr.rel target = $region72
              $region77: #{avg_pool_pad.2} parent=69 // loop_exit
                _
            $region70: #{avg_pool_pad.2} parent=61 // pred_fallthru
              _
          $region62: #{avg_pool_pad.2} parent=57 // pred_fallthru
            _
          %337 = vnop
        $region58: #{avg_pool_pad.2} parent=15 // pred_fallthru
          _
      $region16: #{avg_pool_pad.2} parent=5 // pred_fallthru
        _
      %p338 = scmp.le.s32.totalorder 1, %s7
      %p339 = scmp.lt.s32.totalorder %s7, 3
      %p340 = pnand %p338, %p339
      %p341 = pneg %p340
      // Predicated region
      $region93: #{avg_pool_pad.2} parent=5 // pred_check
        _
      $region94: #{avg_pool_pad.2} parent=5 // pred_check_branch
        %343 = sbr.rel (%p340) target = $region96
      $region95: #{avg_pool_pad.2} parent=5 // pred_region
        %s344 = ssub.s32 %s7, 1
        %s345 = sand.u32 %s43, 1
        %s346 = sand.u32 %s43, 1
        %s347 = smul.addr %s346, 128
        %s348 = scalar_lea.vmem [#allocation2], %s347
        // Predicated region
        $region97: #{avg_pool_pad.2} parent=95 // pred_check
          %p349 = pneg %p56
        $region98: #{avg_pool_pad.2} parent=95 // pred_check_branch
          %351 = sbr.rel (%p349) target = $region100
        $region99: #{avg_pool_pad.2} parent=95 // pred_region
          _
        $region100: #{avg_pool_pad.2} parent=95 // pred_fallthru
          _
        %s352 = sand.u32 %s101, 1
        %s353 = sand.u32 %s101, 1
        %s354 = smul.addr %s353, 32
        %s355 = scalar_lea.vmem [#allocation3], %s354
        // Predicated region
        $region101: #{avg_pool_pad.2} parent=95 // pred_check
          %p356 = pneg %p114
        $region102: #{avg_pool_pad.2} parent=95 // pred_check_branch
          %358 = sbr.rel (%p356) target = $region104
        $region103: #{avg_pool_pad.2} parent=95 // pred_region
          _
        $region104: #{avg_pool_pad.2} parent=95 // pred_fallthru
          _
        %s359 = sand.u32 %s43, 1
        %s360 = sand.u32 %s43, 1
        %s361 = smul.addr %s360, 128
        %s362 = scalar_lea.vmem [#allocation2], %s361
        %p363 = pneg %p56
        %p364 = pneg %p53
        %s365 = sand.u32 %s101, 1
        %s366 = sand.u32 %s101, 1
        %s367 = smul.addr %s366, 32
        %s368 = scalar_lea.vmem [#allocation3], %s367
        %p369 = pneg %p114
        %p370 = pneg %p111
        %p371 = pneg %p144
        %p372 = pneg %p141
        %s373 = smul.u32 4, %s19
        %p374 = scmp.lt.s32.totalorder %s17, 0
        %s375 = scalar_select %p374, %s17, 0
        %p376 = scmp.lt.s32.totalorder %s373, 7
        %s377 = scalar_select %p376, %s373, 7
        %p378 = scmp.lt.s32.totalorder %s18, 0
        %s379 = scalar_select %p378, %s18, 0
        %s380 = sadd.s32 %s379, %s377
        %s381 = smul.addr %s375, 8
        %s382 = sadd.s32 %s380, %s381
        %s383 = smul.addr %s382, 8
        %s384 = scalar_lea.vmem %s1, %s383
        %s385 = smul.u32 4, %s19
        %s386 = sadd.s32 %s19, 1
        %s387 = smul.u32 %s386, 4
        %p388 = scmp.lt.s32.totalorder %s387, 0
        %s389 = ssub.s32 0, %s387
        %s390 = scalar_select %p388, %s389, %s387
        %s391 = sand.u32 %s390, 7
        %s392 = ssub.s32 0, %s391
        %s393 = scalar_select %p388, %s392, %s391
        %p394 = scmp.ne.s32.totalorder %s393, 0
        %p395 = scmp.lt.s32.totalorder %s393, 0
        %p396 = pnand %p395, %p394
        %p397 = pneg %p396
        %s398 = sadd.s32 %s393, 8
        %s399 = scalar_select %p397, %s398, %s393
        %s400 = smul.u32 4, %s19
        %p401 = scmp.lt.s32.totalorder %s17, 0
        %s402 = scalar_select %p401, %s17, 0
        %p403 = scmp.lt.s32.totalorder %s400, 7
        %s404 = scalar_select %p403, %s400, 7
        %p405 = scmp.lt.s32.totalorder %s18, 0
        %s406 = scalar_select %p405, %s18, 0
        %s407 = sadd.s32 %s406, %s404
        %s408 = smul.addr %s402, 8
        %s409 = sadd.s32 %s407, %s408
        %s410 = smul.addr %s409, 8
        %s411 = scalar_lea.vmem %s1, %s410
        %s412 = smul.u32 4, %s19
        %p413 = scmp.eq.s32.totalorder %s19, 1
        %v414 = vld [vmem:[%s348] sm:$0xff]
        %v415 = vld [vmem:[%s348 + $0x8] sm:$0xff]
        %v416 = vld [vmem:[%s348 + $0x10] sm:$0xff]
        %v417 = vld [vmem:[%s348 + $0x18] sm:$0xff]
        %s418 = scalar_lea.vmem %s348, 32 [#allocation2]
        %v419 = vld [vmem:[%s418] sm:$0xff]
        %v420 = vld [vmem:[%s418 + $0x8] sm:$0xff]
        %v421 = vld [vmem:[%s418 + $0x10] sm:$0xff]
        %v422 = vld [vmem:[%s418 + $0x18] sm:$0xff]
        %v423 = vadd.f32 %v414, %v419
        %v424 = vadd.f32 %v415, %v420
        %v425 = vadd.f32 %v416, %v421
        %v426 = vadd.f32 %v417, %v422
        %s427 = scalar_lea.vmem %s348, 64 [#allocation2]
        %v428 = vld [vmem:[%s427] sm:$0xff]
        %v429 = vld [vmem:[%s427 + $0x8] sm:$0xff]
        %v430 = vld [vmem:[%s427 + $0x10] sm:$0xff]
        %v431 = vld [vmem:[%s427 + $0x18] sm:$0xff]
        %v432 = vadd.f32 %v423, %v428
        %v433 = vadd.f32 %v424, %v429
        %v434 = vadd.f32 %v425, %v430
        %v435 = vadd.f32 %v426, %v431
        %s436 = scalar_lea.vmem %s348, 96 [#allocation2]
        %v437 = vld [vmem:[%s436] sm:$0xff]
        %v438 = vld [vmem:[%s436 + $0x8] sm:$0xff]
        %v439 = vld [vmem:[%s436 + $0x10] sm:$0xff]
        %v440 = vld [vmem:[%s436 + $0x18] sm:$0xff]
        %v441 = vadd.f32 %v432, %v437
        %v442 = vadd.f32 %v433, %v438
        %v443 = vadd.f32 %v434, %v439
        %v444 = vadd.f32 %v435, %v440
        %v445 = vld [vmem:[%s355] sm:$0xff]
        %s446 = scalar_select %p413, 1, 0
        %v447 = vstv %s446
        %vm448 = vcmp.eq.s32.totalorder %v447, 1
        %v449 = vsel %vm448, 0.0, %v445
        %s450 = scalar_lea.vmem %s355, 8 [#allocation3]
        %v451 = vld [vmem:[%s450] sm:$0xff]
        %v452 = vsel %vm448, 0.0, %v451
        %s453 = scalar_lea.vmem %s348, 8 [#allocation2]
        %v454 = vld [vmem:[%s453] sm:$0xff]
        %v455 = vld [vmem:[%s453 + $0x8] sm:$0xff]
        %v456 = vld [vmem:[%s453 + $0x10] sm:$0xff]
        %s457 = scalar_lea.vmem %s348, 40 [#allocation2]
        %v458 = vld [vmem:[%s457] sm:$0xff]
        %v459 = vld [vmem:[%s457 + $0x8] sm:$0xff]
        %v460 = vld [vmem:[%s457 + $0x10] sm:$0xff]
        %v461 = vadd.f32 %v441, %v454
        %v462 = vadd.f32 %v442, %v455
        %v463 = vadd.f32 %v443, %v456
        %v464 = vadd.f32 %v444, %v449
        %v465 = vadd.f32 %v461, %v458
        %v466 = vadd.f32 %v462, %v459
        %v467 = vadd.f32 %v463, %v460
        %v468 = vadd.f32 %v464, %v452
        %v469 = vld [vmem:[%s348 + $0x1] sm:$0x7f]
        %v470 = vld [vmem:[%s348 + $0x9] sm:$0x7f]
        %v471 = vld [vmem:[%s348 + $0x11] sm:$0x7f]
        %v472 = vld [vmem:[%s348 + $0x19] sm:$0x7f]
        %v473 = vld [vmem:[%s427 + $0x1] sm:$0x7f]
        %v474 = vld [vmem:[%s427 + $0x9] sm:$0x7f]
        %v475 = vld [vmem:[%s427 + $0x11] sm:$0x7f]
        %v476 = vld [vmem:[%s427 + $0x19] sm:$0x7f]
        %v477 = vadd.f32 %v469, %v473
        %v478 = vadd.f32 %v470, %v474
        %v479 = vadd.f32 %v471, %v475
        %v480 = vadd.f32 %v472, %v476
        %v485 = vrot.slane %v454, 1
        %v486 = vrot.slane %v455, 1
        %v487 = vrot.slane %v456, 1
        %v488 = vrot.slane %v449, 1
        %v493 = vadd.f32 %v477, %v485
        %v494 = vadd.f32 %v478, %v486
        %v495 = vadd.f32 %v479, %v487
        %v496 = vadd.f32 %v480, %v488
        %vm497 = vcmask 1046528
        %v498 = vsel %vm497, %v493, 0.0
        %v499 = vsel %vm497, %v494, 0.0
        %v500 = vsel %vm497, %v495, 0.0
        %v501 = vsel %vm497, %v496, 0.0
        %v502 = vadd.f32 %v465, %v498
        %v503 = vadd.f32 %v466, %v499
        %v504 = vadd.f32 %v467, %v500
        %v505 = vadd.f32 %v468, %v501
        %v506 = vlaneseq
        %v507 = vshrl.u32 %v506, 7
        %v508 = vsel %vm448, 1.5, 1.0
        %vm509 = vcmp.eq.s32.totalorder %v507, 7
        %v510 = vsel %vm509, 1.5, 1.0
        %v511 = vmul.f32 %v508, %v510
        %v512 = vmul.f32 %v510, 0.11111111
        %v513 = vmul.f32 %v511, 0.11111111
        %v514 = vmul.f32 %v502, %v512
        %v515 = vmul.f32 %v503, %v512
        %v516 = vmul.f32 %v504, %v512
        %v517 = vmul.f32 %v505, %v513
        %vm518 = vcmask 64512
        %519 = vst.msk [vmem:[%s411] sm:$0xff] %vm518, %v514
        %520 = vst.msk [vmem:[%s411 + $0x8] sm:$0xff] %vm518, %v515
        %521 = vst.msk [vmem:[%s411 + $0x10] sm:$0xff] %vm518, %v516
        %522 = vst.msk [vmem:[%s411 + $0x18] sm:$0xff] %vm518, %v517
        %s523 = smul.u32 4, %s19
        %p524 = scmp.lt.s32.totalorder %s17, 0
        %s525 = scalar_select %p524, %s17, 0
        %p526 = scmp.lt.s32.totalorder %s523, 7
        %s527 = scalar_select %p526, %s523, 7
        %p528 = scmp.lt.s32.totalorder %s18, 0
        %s529 = scalar_select %p528, %s18, 0
        %s530 = sadd.s32 %s529, %s527
        %s531 = smul.addr %s525, 8
        %s532 = sadd.s32 %s530, %s531
        %s533 = smul.addr %s532, 8
        %s534 = scalar_lea.vmem %s1, %s533
        // Predicated region
        $region105: #{avg_pool_pad.2} parent=95 // pred_check
          %p535 = pneg %p141
        $region106: #{avg_pool_pad.2} parent=95 // pred_check_branch
          %537 = sbr.rel (%p535) target = $region108
        $region107: #{avg_pool_pad.2} parent=95 // pred_region
          %s538 = smul.u32 4, %s19
        $region108: #{avg_pool_pad.2} parent=95 // pred_fallthru
          _
      $region96: #{avg_pool_pad.2} parent=5 // pred_fallthru
        _
      %p539 = scmp.le.s32.totalorder 2, %s7
      // Predicated region
      $region109: #{avg_pool_pad.2} parent=5 // pred_check
        %p540 = pneg %p539
      $region110: #{avg_pool_pad.2} parent=5 // pred_check_branch
        %542 = sbr.rel (%p540) target = $region112
      $region111: #{avg_pool_pad.2} parent=5 // pred_region
        %s543 = ssub.s32 %s7, 2
        // Predicated region
        $region113: #{avg_pool_pad.2} parent=111 // pred_check
          %p544 = pneg %p147
        $region114: #{avg_pool_pad.2} parent=111 // pred_check_branch
          %546 = sbr.rel (%p544) target = $region116
        $region115: #{avg_pool_pad.2} parent=111 // pred_region
          %s547 = smul.u32 4, %s22
          %p548 = scmp.lt.s32.totalorder %s20, 0
          %s549 = scalar_select %p548, %s20, 0
          %p550 = scmp.lt.s32.totalorder %s547, 7
          %s551 = scalar_select %p550, %s547, 7
          %p552 = scmp.lt.s32.totalorder %s21, 0
          %s553 = scalar_select %p552, %s21, 0
          %s554 = sadd.s32 %s553, %s551
          %s555 = smul.addr %s549, 8
          %s556 = sadd.s32 %s554, %s555
          %s557 = smul.addr %s556, 8
          %s558 = scalar_lea.vmem %s1, %s557
        $region116: #{avg_pool_pad.2} parent=111 // pred_fallthru
          _
      $region112: #{avg_pool_pad.2} parent=5 // pred_fallthru
        _
    $region6: #{avg_pool_pad.2} parent=1 // loop_footer
      %s11 = sadd.s32 1, %s7
    $region7: #{avg_pool_pad.2} parent=1 // loop_footer_branch
      %6 = sbr.rel target = $region3
    $region8: #{avg_pool_pad.2} parent=1 // loop_exit
      _

</llo_original>
